<compile_context>
chip_gen: v7x
topology: tpu7x:2x2x1
jax: 0.10.0
libtpu: 0.0.40
codegen_flags: <defaults>
</compile_context>

<pallas_src>
import jax
import jax.numpy as jnp
from jax import lax
from jax.experimental import pallas as pl
from jax.experimental.pallas import tpu as pltpu


# ----------------------------- Pallas kernel ---------------------------------
def _bisenet_head_kernel(p_ref, w3_ref, b3_ref, w1_ref, b1_ref, ak_ref, out_ref):
    # p_ref  : (1, 9*Cin, H*W)   im2col patches for one batch element (lane = H*W)
    # w3_ref : (Cmid, 9*Cin)     conv3x3 weight with BN scale folded in
    # b3_ref : (Cmid, 1)         folded BN bias (f32)
    # w1_ref : (Cout, Cmid)      conv1x1 weight
    # b1_ref : (Cout, 1)         conv1x1 bias (f32)
    # ak_ref : (H*W, oH*oW)      kron(Ah, Aw)^T bilinear matrix (align_corners=True)
    # out_ref: (1, Cout, oH*oW)  lane-dense output
    patches = p_ref[0]                                             # (9*Cin, H*W)

    # 3x3 conv as one im2col GEMM, f32 accumulation on the MXU.
    fm = jnp.dot(w3_ref[...], patches,
                 preferred_element_type=jnp.float32)               # (Cmid, H*W)
    # Folded BatchNorm bias + ReLU (f32 on the VPU — free under MXU slack).
    fm = jnp.maximum(fm + b3_ref[...], 0.0)

    # 1x1 conv + bias as an explicit 2D dot.
    out = jnp.dot(w1_ref[...], fm.astype(w1_ref.dtype),
                  preferred_element_type=jnp.float32)              # (Cout, H*W)
    out = out + b1_ref[...]

    # Bilinear upsample as a single lane-dense matmul (oH*oW lanes, unmasked vst).
    up = jnp.dot(out.astype(ak_ref.dtype), ak_ref[...],
                 preferred_element_type=jnp.float32)               # (Cout, oH*oW)
    out_ref[0] = up.astype(out_ref.dtype)


# ------------------------------- helpers --------------------------------------
def _interp_matrix(out_size: int, in_size: int) -> jnp.ndarray:
    """Row matrix A s.t. (A @ v) == 1-D bilinear resize of v, align_corners=True."""
    if out_size == in_size:
        return jnp.eye(out_size, dtype=jnp.float32)
    i = jnp.arange(out_size, dtype=jnp.float32)
    if out_size == 1:
        s = jnp.zeros((1,), jnp.float32)
    else:
        s = i * (in_size - 1) / (out_size - 1)
    i0 = jnp.clip(jnp.floor(s).astype(jnp.int32), 0, max(in_size - 2, 0))
    frac = s - i0.astype(jnp.float32)
    m = jnp.zeros((out_size, in_size), jnp.float32)
    rows = jnp.arange(out_size)
    m = m.at[rows, i0].add(1.0 - frac)
    m = m.at[rows, jnp.minimum(i0 + 1, in_size - 1)].add(frac)
    return m


def _round_up(x: int, m: int) -> int:
    return (x + m - 1) // m * m


def _padded_bytes(shape, itemsize) -> int:
    """Approx VMEM bytes of a block after (8,128) tile padding."""
    s = list(shape)
    s[-1] = _round_up(s[-1], 128)
    if len(s) >= 2:
        s[-2] = _round_up(s[-2], 8)
    n = 1
    for d in s:
        n *= d
    return n * itemsize


# ------------------------------- wrapper --------------------------------------
def bisenet_head_forward(x_nchw, params, scale: int, compute_dtype=jnp.float32):
    """x_nchw: (B, Cin, H, W) float32. Returns (B, Cout, H*scale, W*scale) NCHW."""
    w3, b3, w1, b1 = params                     # kernel layouts (see make_params)
    B, Cin, H, W = x_nchw.shape
    Cout, Cmid = w1.shape
    oH, oW = (H * scale, W * scale) if scale > 1 else (H, W)

    # --- wrapper-side layout plumbing (no compute hoisted out of the kernel) ---
    # im2col patches: (B, 9*Cin, H*W), rows ordered (ky, kx, ci) to match w3.
    # TODO(synk): at realistic BiSeNet resolutions, tile oH in the grid and fold
    # padding / patch extraction into the kernel via halo index_maps instead of a
    # wrapper-side 9x expansion (needed for v7x 64 MiB VMEM at e.g. 64x64 x8).
    x_pad = jnp.pad(x_nchw.astype(jnp.float32), ((0, 0), (0, 0), (1, 1), (1, 1)))
    taps = [x_pad[:, :, ky:ky + H, kx:kx + W]
            for ky in range(3) for kx in range(3)]
    patches = jnp.stack(taps, axis=1).reshape(B, 9 * Cin, H * W)
    patches = patches.astype(compute_dtype)

    ah = _interp_matrix(oH, H)
    aw = _interp_matrix(oW, W)
    ak = jnp.kron(ah, aw).T.astype(compute_dtype)        # (H*W, oH*oW)

    w3c = w3.astype(compute_dtype)
    w1c = w1.astype(compute_dtype)

    # VMEM budget: double-buffered blocks + in-kernel intermediates + headroom.
    it = jnp.dtype(compute_dtype).itemsize
    block_bytes = (
        _padded_bytes((1, 9 * Cin, H * W), it)
        + _padded_bytes((Cmid, 9 * Cin), it)
        + _padded_bytes((Cmid, 1), 4)
        + _padded_bytes((Cout, Cmid), it)
        + _padded_bytes((Cout, 1), 4)
        + _padded_bytes((H * W, oH * oW), it)
        + _padded_bytes((1, Cout, oH * oW), 4)
    )
    interm_bytes = (_padded_bytes((Cmid, H * W), 4)
                    + _padded_bytes((Cout, H * W), 4)
                    + _padded_bytes((Cout, oH * oW), 4))
    vmem_limit = 2 * block_bytes + 2 * interm_bytes + (4 << 20)
    vmem_limit = int(min(max(vmem_limit, 32 << 20), 64 << 20))

    out_flat = pl.pallas_call(
        _bisenet_head_kernel,
        out_shape=jax.ShapeDtypeStruct((B, Cout, oH * oW), jnp.float32),
        grid=(B,),
        in_specs=[
            pl.BlockSpec((1, 9 * Cin, H * W), lambda b: (b, 0, 0)),
            pl.BlockSpec((Cmid, 9 * Cin), lambda b: (0, 0)),
            pl.BlockSpec((Cmid, 1), lambda b: (0, 0)),
            pl.BlockSpec((Cout, Cmid), lambda b: (0, 0)),
            pl.BlockSpec((Cout, 1), lambda b: (0, 0)),
            pl.BlockSpec((H * W, oH * oW), lambda b: (0, 0)),
        ],
        out_specs=pl.BlockSpec((1, Cout, oH * oW), lambda b: (b, 0, 0)),
        compiler_params=pltpu.CompilerParams(
            dimension_semantics=("parallel",),
            vmem_limit_bytes=vmem_limit),
    )(patches, w3c, b3, w1c, b1, ak)

    # Free contiguous reshape back to NCHW (no transpose, no extra HBM pass).
    return out_flat.reshape(B, Cout, oH, oW)


def make_params(key, in_planes: int, out_planes: int, is_aux: bool = False):
    """Deterministic synthetic parameters; BN (eval mode) is folded into conv3x3."""
    cmid = 128 if is_aux else 64
    k = jax.random.split(key, 7)
    w3_oihw = jax.random.normal(k[0], (cmid, in_planes, 3, 3), jnp.float32) * 0.1
    gamma = 1.0 + 0.1 * jax.random.normal(k[1], (cmid,), jnp.float32)
    beta = 0.1 * jax.random.normal(k[2], (cmid,), jnp.float32)
    mean = 0.05 * jax.random.normal(k[3], (cmid,), jnp.float32)
    var = jnp.abs(jax.random.normal(k[4], (cmid,), jnp.float32)) + 0.5
    eps = 1e-5
    # TODO(synk): BN is implemented in inference (running-stats) mode and folded;
    # PyTorch training-mode batch statistics are not reproduced.
    scale = gamma / jnp.sqrt(var + eps)
    w3_folded = w3_oihw * scale[:, None, None, None]            # (Cmid, Cin, 3, 3)
    b3_folded = beta - mean * scale                             # (Cmid,)

    w1_oihw = jax.random.normal(k[5], (out_planes, cmid, 1, 1), jnp.float32) * 0.1
    b1 = 0.1 * jax.random.normal(k[6], (out_planes,), jnp.float32)

    # Kernel layouts (channel-first, im2col-folded conv3x3):
    #   w3_k: (Cmid, 9*Cin) with column order (ky, kx, ci)
    #   b3_k: (Cmid, 1)   w1_k: (Cout, Cmid)   b1_k: (Cout, 1)
    w3_k = jnp.transpose(w3_folded, (0, 2, 3, 1)).reshape(cmid, 9 * in_planes)
    b3_k = b3_folded[:, None]
    w1_k = w1_oihw[:, :, 0, 0]
    b1_k = b1[:, None]
    return (w3_k, b3_k, w1_k, b1_k), (w3_folded, b3_folded, w1_oihw, b1)


def reference_forward(x_nchw, torch_style_params, scale: int):
    """Pure-JAX reference with the same semantics, for correctness checking."""
    w3_folded, b3_folded, w1_oihw, b1 = torch_style_params
    fm = lax.conv_general_dilated(x_nchw, w3_folded, (1, 1), ((1, 1), (1, 1)),
                                  dimension_numbers=('NCHW', 'OIHW', 'NCHW'))
    fm = jnp.maximum(fm + b3_folded[None, :, None, None], 0.0)
    out = lax.conv_general_dilated(fm, w1_oihw, (1, 1), 'VALID',
                                   dimension_numbers=('NCHW', 'OIHW', 'NCHW'))
    out = out + b1[None, :, None, None]
    if scale > 1:
        B, C, H, W = out.shape
        ah = _interp_matrix(H * scale, H)
        aw = _interp_matrix(W * scale, W)
        out = jnp.einsum('oh,nchw->ncow', ah, out)
        out = jnp.einsum('pw,ncow->ncop', aw, out)
    return out


if __name__ == "__main__":
    key = jax.random.PRNGKey(0)
    B, Cin, H, W = 2, 4, 16, 16
    out_planes, scale, is_aux = 5, 2, False

    kx, kp = jax.random.split(key)
    x = jax.random.normal(kx, (B, Cin, H, W), jnp.float32)
    kernel_params, torch_params = make_params(kp, Cin, out_planes, is_aux)

    out = bisenet_head_forward(x, kernel_params, scale)
    out = jax.block_until_ready(out)

    ref = jax.block_until_ready(reference_forward(x, torch_params, scale))
    assert out.shape == (B, out_planes, H * scale, W * scale), out.shape
    assert jnp.allclose(out, ref, atol=1e-4, rtol=1e-4), float(
        jnp.max(jnp.abs(out - ref)))

    print("KERNEL_OK")
</pallas_src>

<mosaic_0001>
module attributes {stable_mosaic.version = 11 : i64} {
  func.func @_bisenet_head_kernel(%arg0: i32, %arg1: memref<1x36x256xf32, #tpu.memory_space<vmem>>, %arg2: memref<64x36xf32, #tpu.memory_space<vmem>>, %arg3: memref<64x1xf32, #tpu.memory_space<vmem>>, %arg4: memref<5x64xf32, #tpu.memory_space<vmem>>, %arg5: memref<5x1xf32, #tpu.memory_space<vmem>>, %arg6: memref<256x1024xf32, #tpu.memory_space<vmem>>, %arg7: memref<1x5x1024xf32, #tpu.memory_space<vmem>>) attributes {dimension_semantics = [#tpu.dimension_semantics<parallel>], iteration_bounds = array<i64: 2>, scalar_prefetch = 0 : i64, scratch_operands = 0 : i64, tpu.core_type = #tpu.core_type<tc>, window_params = [{transform_indices = @transform_0, window_bounds = array<i64: 1, 36, 256>}, {pipeline_mode = #tpu.pipeline_mode<synchronous>, transform_indices = @transform_1, window_bounds = array<i64: 64, 36>}, {pipeline_mode = #tpu.pipeline_mode<synchronous>, transform_indices = @transform_2, window_bounds = array<i64: 64, 1>}, {pipeline_mode = #tpu.pipeline_mode<synchronous>, transform_indices = @transform_3, window_bounds = array<i64: 5, 64>}, {pipeline_mode = #tpu.pipeline_mode<synchronous>, transform_indices = @transform_4, window_bounds = array<i64: 5, 1>}, {pipeline_mode = #tpu.pipeline_mode<synchronous>, transform_indices = @transform_5, window_bounds = array<i64: 256, 1024>}, {transform_indices = @transform_6, window_bounds = array<i64: 1, 5, 1024>}]} {
    %c0 = arith.constant 0 : index
    %c0_0 = arith.constant 0 : index
    %c0_1 = arith.constant 0 : index
    %0 = vector.load %arg1[%c0, %c0_0, %c0_1] : memref<1x36x256xf32, #tpu.memory_space<vmem>>, vector<1x36x256xf32>
    %1 = vector.shape_cast %0 : vector<1x36x256xf32> to vector<36x256xf32>
    %c0_2 = arith.constant 0 : index
    %c0_3 = arith.constant 0 : index
    %2 = vector.load %arg2[%c0_2, %c0_3] : memref<64x36xf32, #tpu.memory_space<vmem>>, vector<64x36xf32>
    %cst = arith.constant dense<0.000000e+00> : vector<64x256xf32>
    %3 = tpu.matmul %2, %1, %cst {dimension_numbers = #tpu.dot_dimension_numbers<[1], [0], [0], [1], [0, 0, 1, 1], [], []>} : vector<64x36xf32>, vector<36x256xf32>, vector<64x256xf32> -> vector<64x256xf32>
    %c0_4 = arith.constant 0 : index
    %c0_5 = arith.constant 0 : index
    %4 = vector.load %arg3[%c0_4, %c0_5] : memref<64x1xf32, #tpu.memory_space<vmem>>, vector<64x1xf32>
    %5 = vector.broadcast %4 : vector<64x1xf32> to vector<64x256xf32>
    %6 = arith.addf %3, %5 : vector<64x256xf32>
    %cst_6 = arith.constant 0.000000e+00 : f32
    %7 = vector.broadcast %cst_6 : f32 to vector<64x256xf32>
    %8 = arith.maximumf %6, %7 : vector<64x256xf32>
    %c0_7 = arith.constant 0 : index
    %c0_8 = arith.constant 0 : index
    %9 = vector.load %arg4[%c0_7, %c0_8] : memref<5x64xf32, #tpu.memory_space<vmem>>, vector<5x64xf32>
    %cst_9 = arith.constant dense<0.000000e+00> : vector<5x256xf32>
    %10 = tpu.matmul %9, %8, %cst_9 {dimension_numbers = #tpu.dot_dimension_numbers<[1], [0], [0], [1], [0, 0, 1, 1], [], []>} : vector<5x64xf32>, vector<64x256xf32>, vector<5x256xf32> -> vector<5x256xf32>
    %c0_10 = arith.constant 0 : index
    %c0_11 = arith.constant 0 : index
    %11 = vector.load %arg5[%c0_10, %c0_11] : memref<5x1xf32, #tpu.memory_space<vmem>>, vector<5x1xf32>
    %12 = vector.broadcast %11 : vector<5x1xf32> to vector<5x256xf32>
    %13 = arith.addf %10, %12 : vector<5x256xf32>
    %c0_12 = arith.constant 0 : index
    %c0_13 = arith.constant 0 : index
    %14 = vector.load %arg6[%c0_12, %c0_13] : memref<256x1024xf32, #tpu.memory_space<vmem>>, vector<256x1024xf32>
    %cst_14 = arith.constant dense<0.000000e+00> : vector<5x1024xf32>
    %15 = tpu.matmul %13, %14, %cst_14 {dimension_numbers = #tpu.dot_dimension_numbers<[1], [0], [0], [1], [0, 0, 1, 1], [], []>} : vector<5x256xf32>, vector<256x1024xf32>, vector<5x1024xf32> -> vector<5x1024xf32>
    %c0_15 = arith.constant 0 : index
    %c0_16 = arith.constant 0 : index
    %c0_17 = arith.constant 0 : index
    %16 = vector.load %arg7[%c0_15, %c0_16, %c0_17] : memref<1x5x1024xf32, #tpu.memory_space<vmem>>, vector<1x5x1024xf32>
    %17 = vector.shape_cast %16 : vector<1x5x1024xf32> to vector<5x1024xf32>
    %18 = vector.shape_cast %15 : vector<5x1024xf32> to vector<1x5x1024xf32>
    tpu.vector_store %arg7[%c0_15, %c0_16, %c0_17], %18 {strides = array<i32>} : memref<1x5x1024xf32, #tpu.memory_space<vmem>>, vector<1x5x1024xf32>,
    return
  }
  func.func @transform_0(%arg0: i32) -> (i32, i32, i32) {
    %c0_i32 = arith.constant 0 : i32
    %c0_i32_0 = arith.constant 0 : i32
    %c0_i32_1 = arith.constant 0 : i32
    return %arg0, %c0_i32, %c0_i32_0 : i32, i32, i32
  }
  func.func @transform_1(%arg0: i32) -> (i32, i32) {
    %c0_i32 = arith.constant 0 : i32
    %c0_i32_0 = arith.constant 0 : i32
    %c0_i32_1 = arith.constant 0 : i32
    return %c0_i32, %c0_i32_0 : i32, i32
  }
  func.func @transform_2(%arg0: i32) -> (i32, i32) {
    %c0_i32 = arith.constant 0 : i32
    %c0_i32_0 = arith.constant 0 : i32
    %c0_i32_1 = arith.constant 0 : i32
    return %c0_i32, %c0_i32_0 : i32, i32
  }
  func.func @transform_3(%arg0: i32) -> (i32, i32) {
    %c0_i32 = arith.constant 0 : i32
    %c0_i32_0 = arith.constant 0 : i32
    %c0_i32_1 = arith.constant 0 : i32
    return %c0_i32, %c0_i32_0 : i32, i32
  }
  func.func @transform_4(%arg0: i32) -> (i32, i32) {
    %c0_i32 = arith.constant 0 : i32
    %c0_i32_0 = arith.constant 0 : i32
    %c0_i32_1 = arith.constant 0 : i32
    return %c0_i32, %c0_i32_0 : i32, i32
  }
  func.func @transform_5(%arg0: i32) -> (i32, i32) {
    %c0_i32 = arith.constant 0 : i32
    %c0_i32_0 = arith.constant 0 : i32
    %c0_i32_1 = arith.constant 0 : i32
    return %c0_i32, %c0_i32_0 : i32, i32
  }
  func.func @transform_6(%arg0: i32) -> (i32, i32, i32) {
    %c0_i32 = arith.constant 0 : i32
    %c0_i32_0 = arith.constant 0 : i32
    %c0_i32_1 = arith.constant 0 : i32
    return %arg0, %c0_i32, %c0_i32_0 : i32, i32, i32
  }
}

</mosaic_0001>

<llo_original>
// kernel: tpu_custom_call.1
$region0: #{tpu_custom_call.1}
  #allocation0 [shape = 'u32[]', space=smem, size = 0x4, offset = 0x4, fixed_abs, tag = 'smem constant byte address 0x4 - core index']
  #allocation1 [shape = 'u32[144,128]{1,0:T(1,128)}', space=vmem, size = 0x12000, scoped, tag = 'internal scratch']
  %s0 = inlined_call_operand.vmem [shape: f32[2,36,256], index: 0, kind: input, shape index: {}]
  %s1 = inlined_call_operand.vmem [shape: f32[64,36], index: 1, kind: input, shape index: {}]
  %s2 = inlined_call_operand.vmem [shape: f32[64,1], index: 2, kind: input, shape index: {}]
  %s3 = inlined_call_operand.vmem [shape: f32[5,64], index: 3, kind: input, shape index: {}]
  %s4 = inlined_call_operand.vmem [shape: f32[5,1], index: 4, kind: input, shape index: {}]
  %s5 = inlined_call_operand.hbm [shape: f32[256,1024], index: 5, kind: input, shape index: {}]
  %s6 = inlined_call_operand.vmem [shape: f32[2,5,1024], index: 6, kind: output, shape index: {}]
  %s7 = sld [smem:[#allocation0]]
  $region61: #{tpu_custom_call.1} parent=0
    _
  %s9 = ssub.s32 1, %s7
  %s10 = scalar_select 0, %s9, %s7
  $region1: #{tpu_custom_call.1} parent=0
    #allocation2 [shape = 'u8[1048576]{0}', space=vmem, size = 0x100000, scoped, tag = 'input window, operand 5, single buffered']
    #allocation3 [shape = 's32[2]{0}', space=sflag, size = 0x8, scoped, tag = 'scoped memory for tpu_custom_call.1']
    %11 = vsyncpa [#allocation3], 0
    loop: start=0, step=1, limit=4
    $region2: #{tpu_custom_call.1} parent=1 // loop_pre_header
      _
    $region3: #{tpu_custom_call.1} parent=1 // loop_header
      %s13 = sphi 0, %s17
      %p14 = scmp.ge.s32.totalorder %s13, 4
      %s23 = sphi 0, %s25
      %s26 = sphi 0, %s23
      %s27 = sphi 0, %s26
      %s43 = sphi 0, %s27
      %s47 = sphi 0, %s47
      %s49 = sphi 0, %s47
      %s50 = sphi 0, %s49
      %s64 = sphi 0, %s50
      %s68 = sphi 0, %s68
      %s70 = sphi 0, %s68
      %s71 = sphi 0, %s70
      %s85 = sphi 0, %s71
      %s89 = sphi 0, %s89
      %s91 = sphi 0, %s89
      %s92 = sphi 0, %s91
      %s106 = sphi 0, %s92
      %s110 = sphi 0, %s110
      %s112 = sphi 0, %s110
      %s113 = sphi 0, %s112
      %s127 = sphi 0, %s113
      %s131 = sphi 0, %s131
      %s133 = sphi 0, %s131
      %s134 = sphi 0, %s133
      %s148 = sphi 0, %s134
      %s154 = sphi 0, %s156
      %s157 = sphi 0, %s154
      %s158 = sphi 0, %s157
      %s174 = sphi 0, %s158
    $region4: #{tpu_custom_call.1} parent=1 // loop_header_branch
      %16 = sbr.rel (%p14) target = $region8
    $region5: #{tpu_custom_call.1} parent=1 // loop_body
      %s18 = ssub.s32 %s13, 1
      %s19 = ssub.s32 %s13, 2
      %s20 = sadd.s32 %s13, 1
      %s21 = ssub.s32 %s13, %s20
      %p22 = scmp.eq.s32.totalorder %s21, 0
      %s24 = sadd.s32 %s23, 1
      %s25 = scalar_select %p22, %s23, %s24
      %p28 = pneg %p22
      %p29 = scmp.eq.s32.totalorder %s13, 1
      %p30 = por %p28, %p29
      %p31 = scmp.ne.s32.totalorder %s23, %s26
      %p32 = scmp.eq.s32.totalorder %s13, 0
      %p33 = por %p31, %p32
      %p34 = scmp.ne.s32.totalorder %s23, %s26
      %p35 = scmp.eq.s32.totalorder %s18, 1
      %p36 = por %p34, %p35
      %p37 = scmp.ne.s32.totalorder %s26, %s27
      %p38 = scmp.eq.s32.totalorder %s18, 0
      %p39 = por %p37, %p38
      %p40 = scmp.ne.s32.totalorder %s26, %s27
      %p41 = scmp.eq.s32.totalorder %s19, 1
      %p42 = por %p40, %p41
      %p44 = scmp.ne.s32.totalorder %s27, %s43
      %p45 = scmp.eq.s32.totalorder %s19, 0
      %p46 = por %p44, %p45
      %s48 = sadd.s32 %s47, 1
      %p51 = scmp.eq.s32.totalorder %s13, 1
      %p52 = scmp.ne.s32.totalorder %s47, %s49
      %p53 = scmp.eq.s32.totalorder %s13, 0
      %p54 = por %p52, %p53
      %p55 = scmp.ne.s32.totalorder %s47, %s49
      %p56 = scmp.eq.s32.totalorder %s18, 1
      %p57 = por %p55, %p56
      %p58 = scmp.ne.s32.totalorder %s49, %s50
      %p59 = scmp.eq.s32.totalorder %s18, 0
      %p60 = por %p58, %p59
      %p61 = scmp.ne.s32.totalorder %s49, %s50
      %p62 = scmp.eq.s32.totalorder %s19, 1
      %p63 = por %p61, %p62
      %p65 = scmp.ne.s32.totalorder %s50, %s64
      %p66 = scmp.eq.s32.totalorder %s19, 0
      %p67 = por %p65, %p66
      %s69 = sadd.s32 %s68, 1
      %p72 = scmp.eq.s32.totalorder %s13, 1
      %p73 = scmp.ne.s32.totalorder %s68, %s70
      %p74 = scmp.eq.s32.totalorder %s13, 0
      %p75 = por %p73, %p74
      %p76 = scmp.ne.s32.totalorder %s68, %s70
      %p77 = scmp.eq.s32.totalorder %s18, 1
      %p78 = por %p76, %p77
      %p79 = scmp.ne.s32.totalorder %s70, %s71
      %p80 = scmp.eq.s32.totalorder %s18, 0
      %p81 = por %p79, %p80
      %p82 = scmp.ne.s32.totalorder %s70, %s71
      %p83 = scmp.eq.s32.totalorder %s19, 1
      %p84 = por %p82, %p83
      %p86 = scmp.ne.s32.totalorder %s71, %s85
      %p87 = scmp.eq.s32.totalorder %s19, 0
      %p88 = por %p86, %p87
      %s90 = sadd.s32 %s89, 1
      %p93 = scmp.eq.s32.totalorder %s13, 1
      %p94 = scmp.ne.s32.totalorder %s89, %s91
      %p95 = scmp.eq.s32.totalorder %s13, 0
      %p96 = por %p94, %p95
      %p97 = scmp.ne.s32.totalorder %s89, %s91
      %p98 = scmp.eq.s32.totalorder %s18, 1
      %p99 = por %p97, %p98
      %p100 = scmp.ne.s32.totalorder %s91, %s92
      %p101 = scmp.eq.s32.totalorder %s18, 0
      %p102 = por %p100, %p101
      %p103 = scmp.ne.s32.totalorder %s91, %s92
      %p104 = scmp.eq.s32.totalorder %s19, 1
      %p105 = por %p103, %p104
      %p107 = scmp.ne.s32.totalorder %s92, %s106
      %p108 = scmp.eq.s32.totalorder %s19, 0
      %p109 = por %p107, %p108
      %s111 = sadd.s32 %s110, 1
      %p114 = scmp.eq.s32.totalorder %s13, 1
      %p115 = scmp.ne.s32.totalorder %s110, %s112
      %p116 = scmp.eq.s32.totalorder %s13, 0
      %p117 = por %p115, %p116
      %p118 = scmp.ne.s32.totalorder %s110, %s112
      %p119 = scmp.eq.s32.totalorder %s18, 1
      %p120 = por %p118, %p119
      %p121 = scmp.ne.s32.totalorder %s112, %s113
      %p122 = scmp.eq.s32.totalorder %s18, 0
      %p123 = por %p121, %p122
      %p124 = scmp.ne.s32.totalorder %s112, %s113
      %p125 = scmp.eq.s32.totalorder %s19, 1
      %p126 = por %p124, %p125
      %p128 = scmp.ne.s32.totalorder %s113, %s127
      %p129 = scmp.eq.s32.totalorder %s19, 0
      %p130 = por %p128, %p129
      %s132 = sadd.s32 %s131, 1
      %p135 = scmp.eq.s32.totalorder %s13, 1
      %p136 = scmp.ne.s32.totalorder %s131, %s133
      %p137 = scmp.eq.s32.totalorder %s13, 0
      %p138 = por %p136, %p137
      %p139 = scmp.ne.s32.totalorder %s131, %s133
      %p140 = scmp.eq.s32.totalorder %s18, 1
      %p141 = por %p139, %p140
      %p142 = scmp.ne.s32.totalorder %s133, %s134
      %p143 = scmp.eq.s32.totalorder %s18, 0
      %p144 = por %p142, %p143
      %p145 = scmp.ne.s32.totalorder %s133, %s134
      %p146 = scmp.eq.s32.totalorder %s19, 1
      %p147 = por %p145, %p146
      %p149 = scmp.ne.s32.totalorder %s134, %s148
      %p150 = scmp.eq.s32.totalorder %s19, 0
      %p151 = por %p149, %p150
      %s152 = ssub.s32 %s13, %s20
      %p153 = scmp.eq.s32.totalorder %s152, 0
      %s155 = sadd.s32 %s154, 1
      %s156 = scalar_select %p153, %s154, %s155
      %p159 = pneg %p153
      %p160 = scmp.eq.s32.totalorder %s13, 1
      %p161 = por %p159, %p160
      %p162 = scmp.ne.s32.totalorder %s154, %s157
      %p163 = scmp.eq.s32.totalorder %s13, 0
      %p164 = por %p162, %p163
      %p165 = scmp.ne.s32.totalorder %s154, %s157
      %p166 = scmp.eq.s32.totalorder %s18, 1
      %p167 = por %p165, %p166
      %p168 = scmp.ne.s32.totalorder %s157, %s158
      %p169 = scmp.eq.s32.totalorder %s18, 0
      %p170 = por %p168, %p169
      %p171 = scmp.ne.s32.totalorder %s157, %s158
      %p172 = scmp.eq.s32.totalorder %s19, 1
      %p173 = por %p171, %p172
      %p175 = scmp.ne.s32.totalorder %s158, %s174
      %p176 = scmp.eq.s32.totalorder %s19, 0
      %p177 = por %p175, %p176
      %p178 = scmp.le.s32.totalorder 1, %s13
      %p179 = scmp.lt.s32.totalorder %s13, 3
      %p180 = pnand %p178, %p179
      %p181 = pneg %p180
      // Predicated region
      $region9: #{tpu_custom_call.1} parent=5 // pred_check
        _
      $region10: #{tpu_custom_call.1} parent=5 // pred_check_branch
        %183 = sbr.rel (%p180) target = $region12
      $region11: #{tpu_custom_call.1} parent=5 // pred_region
        %s184 = ssub.s32 %s13, 1
        // Predicated region
        $region13: #{tpu_custom_call.1} parent=11 // pred_check
          %p185 = pneg %p60
        $region14: #{tpu_custom_call.1} parent=11 // pred_check_branch
          %187 = sbr.rel (%p185) target = $region16
        $region15: #{tpu_custom_call.1} parent=11 // pred_region
          _
        $region16: #{tpu_custom_call.1} parent=11 // pred_fallthru
          _
        // Predicated region
        $region17: #{tpu_custom_call.1} parent=11 // pred_check
          %p188 = pneg %p81
        $region18: #{tpu_custom_call.1} parent=11 // pred_check_branch
          %190 = sbr.rel (%p188) target = $region20
        $region19: #{tpu_custom_call.1} parent=11 // pred_region
          _
        $region20: #{tpu_custom_call.1} parent=11 // pred_fallthru
          _
        // Predicated region
        $region21: #{tpu_custom_call.1} parent=11 // pred_check
          %p191 = pneg %p102
        $region22: #{tpu_custom_call.1} parent=11 // pred_check_branch
          %193 = sbr.rel (%p191) target = $region24
        $region23: #{tpu_custom_call.1} parent=11 // pred_region
          _
        $region24: #{tpu_custom_call.1} parent=11 // pred_fallthru
          _
        // Predicated region
        $region25: #{tpu_custom_call.1} parent=11 // pred_check
          %p194 = pneg %p123
        $region26: #{tpu_custom_call.1} parent=11 // pred_check_branch
          %196 = sbr.rel (%p194) target = $region28
        $region27: #{tpu_custom_call.1} parent=11 // pred_region
          _
        $region28: #{tpu_custom_call.1} parent=11 // pred_fallthru
          _
        // Predicated region
        $region29: #{tpu_custom_call.1} parent=11 // pred_check
          %p197 = pneg %p144
        $region30: #{tpu_custom_call.1} parent=11 // pred_check_branch
          %199 = sbr.rel (%p197) target = $region32
        $region31: #{tpu_custom_call.1} parent=11 // pred_region
          %s201 = ssub.s32 32768, 32768
          %202 = vsyncadd [#allocation3], %s201
          %s203 = sshll.u32 [#allocation2], 4
          %s204 = int_to_ptr.vmem [resolvable:$true] %s203
          %209 = dma.hbm_to_vmem [thread:$0]  %s5, 32768, %s204, [#allocation3], 1024, 1024, 64
        $region32: #{tpu_custom_call.1} parent=11 // pred_fallthru
          _
      $region12: #{tpu_custom_call.1} parent=5 // pred_fallthru
        _
      %p210 = scmp.lt.s32.totalorder %s13, 2
      // Predicated region
      $region33: #{tpu_custom_call.1} parent=5 // pred_check
        %p211 = pneg %p210
      $region34: #{tpu_custom_call.1} parent=5 // pred_check_branch
        %213 = sbr.rel (%p211) target = $region36
      $region35: #{tpu_custom_call.1} parent=5 // pred_region
        // Predicated region
        $region37: #{tpu_custom_call.1} parent=35 // pred_check
          %p214 = pneg %p33
        $region38: #{tpu_custom_call.1} parent=35 // pred_check_branch
          %216 = sbr.rel (%p214) target = $region40
        $region39: #{tpu_custom_call.1} parent=35 // pred_region
          %p217 = scmp.lt.s32.totalorder %s13, 1
          %s218 = scalar_select %p217, %s13, 1
          %s219 = smul.addr %s218, 10
          %s220 = smul.addr %s219, 8
          %s221 = scalar_lea.vmem %s0, %s220
        $region40: #{tpu_custom_call.1} parent=35 // pred_fallthru
          _
      $region36: #{tpu_custom_call.1} parent=5 // pred_fallthru
        _
      %p222 = scmp.le.s32.totalorder 1, %s13
      %p223 = scmp.lt.s32.totalorder %s13, 3
      %p224 = pnand %p222, %p223
      %p225 = pneg %p224
      // Predicated region
      $region41: #{tpu_custom_call.1} parent=5 // pred_check
        _
      $region42: #{tpu_custom_call.1} parent=5 // pred_check_branch
        %227 = sbr.rel (%p224) target = $region44
      $region43: #{tpu_custom_call.1} parent=5 // pred_region
        %s228 = ssub.s32 %s13, 1
        // Predicated region
        $region45: #{tpu_custom_call.1} parent=43 // pred_check
          %p229 = pneg %p144
        $region46: #{tpu_custom_call.1} parent=43 // pred_check_branch
          %231 = sbr.rel (%p229) target = $region48
        $region47: #{tpu_custom_call.1} parent=43 // pred_region
          %232 = dma.done [#allocation3], 32768
        $region48: #{tpu_custom_call.1} parent=43 // pred_fallthru
          _
        %p233 = scmp.lt.s32.totalorder %s18, 1
        %s234 = scalar_select %p233, %s18, 1
        %s235 = smul.addr %s234, 10
        %s236 = smul.addr %s235, 8
        %s237 = scalar_lea.vmem %s0, %s236
        %p238 = pneg %p39
        %p239 = pneg %p36
        %p240 = pneg %p60
        %p241 = pneg %p57
        %p242 = pneg %p81
        %p243 = pneg %p78
        %p244 = pneg %p102
        %p245 = pneg %p99
        %p246 = pneg %p123
        %p247 = pneg %p120
        %p248 = pneg %p144
        %p249 = pneg %p141
        %p250 = pneg %p170
        %p251 = pneg %p167
        %p252 = scmp.lt.s32.totalorder %s18, 1
        %s253 = scalar_select %p252, %s18, 1
        %s254 = smul.addr %s253, 8
        %s255 = smul.addr %s254, 8
        %s256 = scalar_lea.vmem %s6, %s255
        %p257 = scmp.lt.s32.totalorder %s18, 1
        %s258 = scalar_select %p257, %s18, 1
        %s259 = smul.addr %s258, 10
        %s260 = smul.addr %s259, 8
        %s261 = scalar_lea.vmem %s0, %s260
        %p262 = scmp.lt.s32.totalorder %s18, 1
        %s263 = scalar_select %p262, %s18, 1
        %s264 = smul.addr %s263, 8
        %s265 = smul.addr %s264, 8
        %s266 = scalar_lea.vmem %s6, %s265
        %v267 = vld [vmem:[%s261] sm:$0xff]
        %v268 = vld [vmem:[%s261 + $0x8] sm:$0xff]
        %v269 = vld [vmem:[%s261 + $0x10] sm:$0xff]
        %v270 = vld [vmem:[%s261 + $0x18] sm:$0xff]
        %v271 = vld [vmem:[%s261 + $0x20] sm:$0xff]
        %v272 = vld [vmem:[%s261 + $0x28] sm:$0xff]
        %v273 = vld [vmem:[%s261 + $0x30] sm:$0xff]
        %v274 = vld [vmem:[%s261 + $0x38] sm:$0xff]
        %v275 = vld [vmem:[%s261 + $0x40] sm:$0xf]
        %v276 = vld [vmem:[%s261 + $0x48] sm:$0xf]
        %v277 = vld [vmem:[%s1] sm:$0xff]
        %v278 = vld [vmem:[%s1 + $0x8] sm:$0xff]
        %v279 = vld [vmem:[%s1 + $0x10] sm:$0xff]
        %v280 = vld [vmem:[%s1 + $0x18] sm:$0xff]
        %v281 = vld [vmem:[%s1 + $0x20] sm:$0xff]
        %v282 = vld [vmem:[%s1 + $0x28] sm:$0xff]
        %v283 = vld [vmem:[%s1 + $0x30] sm:$0xff]
        %v284 = vld [vmem:[%s1 + $0x38] sm:$0xff]
        %v285 = vld [vmem:[%s2] sm:$0xff]
        %v286 = vld [vmem:[%s2 + $0x8] sm:$0xff]
        %v287 = vld [vmem:[%s2 + $0x10] sm:$0xff]
        %v288 = vld [vmem:[%s2 + $0x18] sm:$0xff]
        %v289 = vld [vmem:[%s2 + $0x20] sm:$0xff]
        %v290 = vld [vmem:[%s2 + $0x28] sm:$0xff]
        %v291 = vld [vmem:[%s2 + $0x30] sm:$0xff]
        %v292 = vld [vmem:[%s2 + $0x38] sm:$0xff]
        %294 = vset.pattern.permute.xlu0 0
        %295 = vperm.xlu0 %294, %v285
        %v296 = vpop.permute.xlu0 %295
        %299 = vset.pattern.permute.xlu0 0
        %300 = vperm.xlu0 %299, %v286
        %v301 = vpop.permute.xlu0 %300
        %304 = vset.pattern.permute.xlu0 0
        %305 = vperm.xlu0 %304, %v287
        %v306 = vpop.permute.xlu0 %305
        %309 = vset.pattern.permute.xlu0 0
        %310 = vperm.xlu0 %309, %v288
        %v311 = vpop.permute.xlu0 %310
        %314 = vset.pattern.permute.xlu0 0
        %315 = vperm.xlu0 %314, %v289
        %v316 = vpop.permute.xlu0 %315
        %319 = vset.pattern.permute.xlu0 0
        %320 = vperm.xlu0 %319, %v290
        %v321 = vpop.permute.xlu0 %320
        %324 = vset.pattern.permute.xlu0 0
        %325 = vperm.xlu0 %324, %v291
        %v326 = vpop.permute.xlu0 %325
        %329 = vset.pattern.permute.xlu0 0
        %330 = vperm.xlu0 %329, %v292
        %v331 = vpop.permute.xlu0 %330
        %vm333 = vcmask 293888
        %v335 = vsel %vm333, %v277, 0
        %v338 = vsel %vm333, %v278, 0
        %v341 = vsel %vm333, %v279, 0
        %v344 = vsel %vm333, %v280, 0
        %v347 = vsel %vm333, %v281, 0
        %v350 = vsel %vm333, %v282, 0
        %v353 = vsel %vm333, %v283, 0
        %v356 = vsel %vm333, %v284, 0
        %vm358 = vcmask 1043456
        %v360 = vsel %vm358, %v275, 0
        %v363 = vsel %vm358, %v276, 0
        %365 = vmatprep.subr.mxu0 %v268
        %366 = vmatpush1.msra.mxu0 %v267
        %367 = vmatprep.subr.mxu0 %v270
        %368 = vmatpush1.msra.mxu0 %v269
        %369 = vmatprep.subr.mxu0 %v272
        %370 = vmatpush1.msra.mxu0 %v271
        %371 = vmatprep.subr.mxu0 %v274
        %372 = vmatpush1.msra.mxu0 %v273
        %373 = vmatprep.subr.mxu0 %v363
        %374 = vmatpush1.msra.mxu0 %v360
        %375 = vmatprep.subr.mxu0 0.0
        %376 = vmatpush1.msra.mxu0 0.0
        %377 = vmatprep.subr.mxu0 0.0
        %378 = vmatpush1.msra.mxu0 0.0
        %379 = vmatprep.subr.mxu0 0.0
        %380 = vmatpush1.msra.mxu0 0.0
        %381 = vmatprep.subr.mxu0 0.0
        %382 = vmatpush1.msra.mxu0 0.0
        %383 = vmatprep.subr.mxu0 0.0
        %384 = vmatpush1.msra.mxu0 0.0
        %385 = vmatprep.subr.mxu0 0.0
        %386 = vmatpush1.msra.mxu0 0.0
        %387 = vmatprep.subr.mxu0 0.0
        %388 = vmatpush1.msra.mxu0 0.0
        %389 = vmatprep.subr.mxu0 0.0
        %390 = vmatpush1.msra.mxu0 0.0
        %391 = vmatprep.subr.mxu0 0.0
        %392 = vmatpush1.msra.mxu0 0.0
        %393 = vmatprep.subr.mxu0 0.0
        %394 = vmatpush1.msra.mxu0 0.0
        %395 = vmatprep.subr.mxu0 0.0
        %396 = vmatpush1.msra.mxu0 0.0
        %397 = vmatprep.subr.mxu0 0.0
        %398 = vmatpush1.msra.mxu0 0.0
        %399 = vmatprep.subr.mxu0 0.0
        %400 = vmatpush1.msra.mxu0 0.0
        %401 = vmatprep.subr.mxu0 0.0
        %402 = vmatpush1.msra.mxu0 0.0
        %403 = vmatprep.subr.mxu0 0.0
        %404 = vmatpush1.msra.mxu0 0.0
        %405 = vmatprep.subr.mxu0 0.0
        %406 = vmatpush1.msra.mxu0 0.0
        %407 = vmatprep.subr.mxu0 0.0
        %408 = vmatpush1.msra.mxu0 0.0
        %409 = vmatprep.subr.mxu0 0.0
        %410 = vmatpush1.msra.mxu0 0.0
        %411 = vmatprep.subr.mxu0 0.0
        %412 = vmatpush1.msra.mxu0 0.0
        %413 = vmatprep.subr.mxu0 0.0
        %414 = vmatpush1.msra.mxu0 0.0
        %415 = vmatprep.subr.mxu0 0.0
        %416 = vmatpush1.msra.mxu0 0.0
        %417 = vmatprep.subr.mxu0 0.0
        %418 = vmatpush1.msra.mxu0 0.0
        %419 = vmatprep.subr.mxu0 0.0
        %420 = vmatpush1.msra.mxu0 0.0
        %421 = vmatprep.subr.mxu0 0.0
        %422 = vmatpush1.msra.mxu0 0.0
        %423 = vmatprep.subr.mxu0 0.0
        %424 = vmatpush1.msra.mxu0 0.0
        %425 = vmatprep.subr.mxu0 0.0
        %426 = vmatpush1.msra.mxu0 0.0
        %427 = vmatprep.subr.mxu0 0.0
        %428 = vmatpush1.msra.mxu0 0.0
        %429 = vmatprep.mubr.f32.mxu0 0.0
        %430 = vmatmul.mubr.f32.gmra.mrb[0].mxu0 %v335
        %v431 = vpop.f32.mrb[0].mxu0
        %v432 = vadd.f32 %v296, %v431
        %v433 = vpop.f32.mrb[0].mxu0
        %v434 = vadd.f32 %v296, %v433
        %435 = vmatprep.mubr.f32.mxu0 0.0
        %436 = vmatmul.mubr.f32.gmra.mrb[0].mxu0 %v338
        %v437 = vpop.f32.mrb[0].mxu0
        %v438 = vadd.f32 %v301, %v437
        %v439 = vpop.f32.mrb[0].mxu0
        %v440 = vadd.f32 %v301, %v439
        %441 = vmatprep.mubr.f32.mxu0 0.0
        %442 = vmatmul.mubr.f32.gmra.mrb[0].mxu0 %v341
        %v443 = vpop.f32.mrb[0].mxu0
        %v444 = vadd.f32 %v306, %v443
        %v445 = vpop.f32.mrb[0].mxu0
        %v446 = vadd.f32 %v306, %v445
        %447 = vmatprep.mubr.f32.mxu0 0.0
        %448 = vmatmul.mubr.f32.gmra.mrb[0].mxu0 %v344
        %v449 = vpop.f32.mrb[0].mxu0
        %v450 = vadd.f32 %v311, %v449
        %v451 = vpop.f32.mrb[0].mxu0
        %v452 = vadd.f32 %v311, %v451
        %453 = vmatprep.mubr.f32.mxu0 0.0
        %454 = vmatmul.mubr.f32.gmra.mrb[0].mxu0 %v347
        %v455 = vpop.f32.mrb[0].mxu0
        %v456 = vadd.f32 %v316, %v455
        %v457 = vpop.f32.mrb[0].mxu0
        %v458 = vadd.f32 %v316, %v457
        %459 = vmatprep.mubr.f32.mxu0 0.0
        %460 = vmatmul.mubr.f32.gmra.mrb[0].mxu0 %v350
        %v461 = vpop.f32.mrb[0].mxu0
        %v462 = vadd.f32 %v321, %v461
        %v463 = vpop.f32.mrb[0].mxu0
        %v464 = vadd.f32 %v321, %v463
        %465 = vmatprep.mubr.f32.mxu0 0.0
        %466 = vmatmul.mubr.f32.gmra.mrb[0].mxu0 %v353
        %v467 = vpop.f32.mrb[0].mxu0
        %v468 = vadd.f32 %v326, %v467
        %v469 = vpop.f32.mrb[0].mxu0
        %v470 = vadd.f32 %v326, %v469
        %471 = vmatprep.mubr.f32.mxu0 0.0
        %472 = vmatmul.mubr.f32.gmra.mrb[0].mxu0 %v356
        %v473 = vpop.f32.mrb[0].mxu0
        %v474 = vadd.f32 %v331, %v473
        %v475 = vpop.f32.mrb[0].mxu0
        %v476 = vadd.f32 %v331, %v475
        %477 = vdwg.mxu0
        %v478 = vmax.f32 %v432, 0.0
        %v479 = vmax.f32 %v434, 0.0
        %v480 = vmax.f32 %v438, 0.0
        %v481 = vmax.f32 %v440, 0.0
        %v482 = vmax.f32 %v444, 0.0
        %v483 = vmax.f32 %v446, 0.0
        %v484 = vmax.f32 %v450, 0.0
        %v485 = vmax.f32 %v452, 0.0
        %v486 = vmax.f32 %v456, 0.0
        %v487 = vmax.f32 %v458, 0.0
        %v488 = vmax.f32 %v462, 0.0
        %v489 = vmax.f32 %v464, 0.0
        %v490 = vmax.f32 %v468, 0.0
        %v491 = vmax.f32 %v470, 0.0
        %v492 = vmax.f32 %v474, 0.0
        %v493 = vmax.f32 %v476, 0.0
        %v494 = vld [vmem:[%s3] sm:$0x1f]
        %v495 = vld [vmem:[%s4] sm:$0x1f]
        %497 = vset.pattern.permute.xlu0 0
        %498 = vperm.xlu0 %497, %v495
        %v499 = vpop.permute.xlu0 %498
        %vm501 = vcmask 523264
        %v503 = vsel %vm501, %v494, 0
        %505 = vmatprep.subr.mxu0 %v479
        %506 = vmatpush1.msra.mxu0 %v478
        %507 = vmatprep.subr.mxu0 %v481
        %508 = vmatpush1.msra.mxu0 %v480
        %509 = vmatprep.subr.mxu0 %v483
        %510 = vmatpush1.msra.mxu0 %v482
        %511 = vmatprep.subr.mxu0 %v485
        %512 = vmatpush1.msra.mxu0 %v484
        %513 = vmatprep.subr.mxu0 %v487
        %514 = vmatpush1.msra.mxu0 %v486
        %515 = vmatprep.subr.mxu0 %v489
        %516 = vmatpush1.msra.mxu0 %v488
        %517 = vmatprep.subr.mxu0 %v491
        %518 = vmatpush1.msra.mxu0 %v490
        %519 = vmatprep.subr.mxu0 %v493
        %520 = vmatpush1.msra.mxu0 %v492
        %521 = vmatprep.subr.mxu0 0.0
        %522 = vmatpush1.msra.mxu0 0.0
        %523 = vmatprep.subr.mxu0 0.0
        %524 = vmatpush1.msra.mxu0 0.0
        %525 = vmatprep.subr.mxu0 0.0
        %526 = vmatpush1.msra.mxu0 0.0
        %527 = vmatprep.subr.mxu0 0.0
        %528 = vmatpush1.msra.mxu0 0.0
        %529 = vmatprep.subr.mxu0 0.0
        %530 = vmatpush1.msra.mxu0 0.0
        %531 = vmatprep.subr.mxu0 0.0
        %532 = vmatpush1.msra.mxu0 0.0
        %533 = vmatprep.subr.mxu0 0.0
        %534 = vmatpush1.msra.mxu0 0.0
        %535 = vmatprep.subr.mxu0 0.0
        %536 = vmatpush1.msra.mxu0 0.0
        %537 = vmatprep.subr.mxu0 0.0
        %538 = vmatpush1.msra.mxu0 0.0
        %539 = vmatprep.subr.mxu0 0.0
        %540 = vmatpush1.msra.mxu0 0.0
        %541 = vmatprep.subr.mxu0 0.0
        %542 = vmatpush1.msra.mxu0 0.0
        %543 = vmatprep.subr.mxu0 0.0
        %544 = vmatpush1.msra.mxu0 0.0
        %545 = vmatprep.subr.mxu0 0.0
        %546 = vmatpush1.msra.mxu0 0.0
        %547 = vmatprep.subr.mxu0 0.0
        %548 = vmatpush1.msra.mxu0 0.0
        %549 = vmatprep.subr.mxu0 0.0
        %550 = vmatpush1.msra.mxu0 0.0
        %551 = vmatprep.subr.mxu0 0.0
        %552 = vmatpush1.msra.mxu0 0.0
        %553 = vmatprep.subr.mxu0 0.0
        %554 = vmatpush1.msra.mxu0 0.0
        %555 = vmatprep.subr.mxu0 0.0
        %556 = vmatpush1.msra.mxu0 0.0
        %557 = vmatprep.subr.mxu0 0.0
        %558 = vmatpush1.msra.mxu0 0.0
        %559 = vmatprep.subr.mxu0 0.0
        %560 = vmatpush1.msra.mxu0 0.0
        %561 = vmatprep.subr.mxu0 0.0
        %562 = vmatpush1.msra.mxu0 0.0
        %563 = vmatprep.subr.mxu0 0.0
        %564 = vmatpush1.msra.mxu0 0.0
        %565 = vmatprep.subr.mxu0 0.0
        %566 = vmatpush1.msra.mxu0 0.0
        %567 = vmatprep.subr.mxu0 0.0
        %568 = vmatpush1.msra.mxu0 0.0
        %569 = vmatprep.mubr.f32.mxu0 0.0
        %570 = vmatmul.mubr.f32.gmra.mrb[0].mxu0 %v503
        %v571 = vpop.f32.mrb[0].mxu0
        %v572 = vadd.f32 %v499, %v571
        %v573 = vpop.f32.mrb[0].mxu0
        %v574 = vadd.f32 %v499, %v573
        %575 = vdwg.mxu0
        %v576 = vld [vmem:[#allocation2] sm:$0xff]
        %v577 = vld [vmem:[#allocation2 + $0x8] sm:$0xff]
        %v578 = vld [vmem:[#allocation2 + $0x10] sm:$0xff]
        %v579 = vld [vmem:[#allocation2 + $0x18] sm:$0xff]
        %v580 = vld [vmem:[#allocation2 + $0x20] sm:$0xff]
        %v581 = vld [vmem:[#allocation2 + $0x28] sm:$0xff]
        %v582 = vld [vmem:[#allocation2 + $0x30] sm:$0xff]
        %v583 = vld [vmem:[#allocation2 + $0x38] sm:$0xff]
        %v584 = vld [vmem:[#allocation2 + $0x40] sm:$0xff]
        %v585 = vld [vmem:[#allocation2 + $0x48] sm:$0xff]
        %v586 = vld [vmem:[#allocation2 + $0x50] sm:$0xff]
        %v587 = vld [vmem:[#allocation2 + $0x58] sm:$0xff]
        %v588 = vld [vmem:[#allocation2 + $0x60] sm:$0xff]
        %v589 = vld [vmem:[#allocation2 + $0x68] sm:$0xff]
        %v590 = vld [vmem:[#allocation2 + $0x70] sm:$0xff]
        %v591 = vld [vmem:[#allocation2 + $0x78] sm:$0xff]
        %v592 = vld [vmem:[#allocation2 + $0x80] sm:$0xff]
        %v593 = vld [vmem:[#allocation2 + $0x88] sm:$0xff]
        %v594 = vld [vmem:[#allocation2 + $0x90] sm:$0xff]
        %v595 = vld [vmem:[#allocation2 + $0x98] sm:$0xff]
        %v596 = vld [vmem:[#allocation2 + $0xa0] sm:$0xff]
        %v597 = vld [vmem:[#allocation2 + $0xa8] sm:$0xff]
        %v598 = vld [vmem:[#allocation2 + $0xb0] sm:$0xff]
        %v599 = vld [vmem:[#allocation2 + $0xb8] sm:$0xff]
        %v600 = vld [vmem:[#allocation2 + $0xc0] sm:$0xff]
        %v601 = vld [vmem:[#allocation2 + $0xc8] sm:$0xff]
        %v602 = vld [vmem:[#allocation2 + $0xd0] sm:$0xff]
        %v603 = vld [vmem:[#allocation2 + $0xd8] sm:$0xff]
        %v604 = vld [vmem:[#allocation2 + $0xe0] sm:$0xff]
        %v605 = vld [vmem:[#allocation2 + $0xe8] sm:$0xff]
        %v606 = vld [vmem:[#allocation2 + $0xf0] sm:$0xff]
        %v607 = vld [vmem:[#allocation2 + $0xf8] sm:$0xff]
        %v608 = vld [vmem:[#allocation2 + $0x100] sm:$0xff]
        %v609 = vld [vmem:[#allocation2 + $0x108] sm:$0xff]
        %v610 = vld [vmem:[#allocation2 + $0x110] sm:$0xff]
        %v611 = vld [vmem:[#allocation2 + $0x118] sm:$0xff]
        %v612 = vld [vmem:[#allocation2 + $0x120] sm:$0xff]
        %v613 = vld [vmem:[#allocation2 + $0x128] sm:$0xff]
        %v614 = vld [vmem:[#allocation2 + $0x130] sm:$0xff]
        %v615 = vld [vmem:[#allocation2 + $0x138] sm:$0xff]
        %v616 = vld [vmem:[#allocation2 + $0x140] sm:$0xff]
        %v617 = vld [vmem:[#allocation2 + $0x148] sm:$0xff]
        %v618 = vld [vmem:[#allocation2 + $0x150] sm:$0xff]
        %v619 = vld [vmem:[#allocation2 + $0x158] sm:$0xff]
        %v620 = vld [vmem:[#allocation2 + $0x160] sm:$0xff]
        %v621 = vld [vmem:[#allocation2 + $0x168] sm:$0xff]
        %v622 = vld [vmem:[#allocation2 + $0x170] sm:$0xff]
        %v623 = vld [vmem:[#allocation2 + $0x178] sm:$0xff]
        %v624 = vld [vmem:[#allocation2 + $0x180] sm:$0xff]
        %v625 = vld [vmem:[#allocation2 + $0x188] sm:$0xff]
        %v626 = vld [vmem:[#allocation2 + $0x190] sm:$0xff]
        %v627 = vld [vmem:[#allocation2 + $0x198] sm:$0xff]
        %v628 = vld [vmem:[#allocation2 + $0x1a0] sm:$0xff]
        %v629 = vld [vmem:[#allocation2 + $0x1a8] sm:$0xff]
        %v630 = vld [vmem:[#allocation2 + $0x1b0] sm:$0xff]
        %v631 = vld [vmem:[#allocation2 + $0x1b8] sm:$0xff]
        %v632 = vld [vmem:[#allocation2 + $0x1c0] sm:$0xff]
        %v633 = vld [vmem:[#allocation2 + $0x1c8] sm:$0xff]
        %v634 = vld [vmem:[#allocation2 + $0x1d0] sm:$0xff]
        %v635 = vld [vmem:[#allocation2 + $0x1d8] sm:$0xff]
        %v636 = vld [vmem:[#allocation2 + $0x1e0] sm:$0xff]
        %v637 = vld [vmem:[#allocation2 + $0x1e8] sm:$0xff]
        %v638 = vld [vmem:[#allocation2 + $0x1f0] sm:$0xff]
        %v639 = vld [vmem:[#allocation2 + $0x1f8] sm:$0xff]
        %v640 = vld [vmem:[#allocation2 + $0x200] sm:$0xff]
        %v641 = vld [vmem:[#allocation2 + $0x208] sm:$0xff]
        %v642 = vld [vmem:[#allocation2 + $0x210] sm:$0xff]
        %v643 = vld [vmem:[#allocation2 + $0x218] sm:$0xff]
        %v644 = vld [vmem:[#allocation2 + $0x220] sm:$0xff]
        %v645 = vld [vmem:[#allocation2 + $0x228] sm:$0xff]
        %v646 = vld [vmem:[#allocation2 + $0x230] sm:$0xff]
        %v647 = vld [vmem:[#allocation2 + $0x238] sm:$0xff]
        %v648 = vld [vmem:[#allocation2 + $0x240] sm:$0xff]
        %v649 = vld [vmem:[#allocation2 + $0x248] sm:$0xff]
        %v650 = vld [vmem:[#allocation2 + $0x250] sm:$0xff]
        %v651 = vld [vmem:[#allocation2 + $0x258] sm:$0xff]
        %v652 = vld [vmem:[#allocation2 + $0x260] sm:$0xff]
        %v653 = vld [vmem:[#allocation2 + $0x268] sm:$0xff]
        %v654 = vld [vmem:[#allocation2 + $0x270] sm:$0xff]
        %v655 = vld [vmem:[#allocation2 + $0x278] sm:$0xff]
        %v656 = vld [vmem:[#allocation2 + $0x280] sm:$0xff]
        %v657 = vld [vmem:[#allocation2 + $0x288] sm:$0xff]
        %v658 = vld [vmem:[#allocation2 + $0x290] sm:$0xff]
        %v659 = vld [vmem:[#allocation2 + $0x298] sm:$0xff]
        %v660 = vld [vmem:[#allocation2 + $0x2a0] sm:$0xff]
        %v661 = vld [vmem:[#allocation2 + $0x2a8] sm:$0xff]
        %v662 = vld [vmem:[#allocation2 + $0x2b0] sm:$0xff]
        %v663 = vld [vmem:[#allocation2 + $0x2b8] sm:$0xff]
        %v664 = vld [vmem:[#allocation2 + $0x2c0] sm:$0xff]
        %v665 = vld [vmem:[#allocation2 + $0x2c8] sm:$0xff]
        %v666 = vld [vmem:[#allocation2 + $0x2d0] sm:$0xff]
        %v667 = vld [vmem:[#allocation2 + $0x2d8] sm:$0xff]
        %v668 = vld [vmem:[#allocation2 + $0x2e0] sm:$0xff]
        %v669 = vld [vmem:[#allocation2 + $0x2e8] sm:$0xff]
        %v670 = vld [vmem:[#allocation2 + $0x2f0] sm:$0xff]
        %v671 = vld [vmem:[#allocation2 + $0x2f8] sm:$0xff]
        %v672 = vld [vmem:[#allocation2 + $0x300] sm:$0xff]
        %v673 = vld [vmem:[#allocation2 + $0x308] sm:$0xff]
        %v674 = vld [vmem:[#allocation2 + $0x310] sm:$0xff]
        %v675 = vld [vmem:[#allocation2 + $0x318] sm:$0xff]
        %v676 = vld [vmem:[#allocation2 + $0x320] sm:$0xff]
        %v677 = vld [vmem:[#allocation2 + $0x328] sm:$0xff]
        %v678 = vld [vmem:[#allocation2 + $0x330] sm:$0xff]
        %v679 = vld [vmem:[#allocation2 + $0x338] sm:$0xff]
        %v680 = vld [vmem:[#allocation2 + $0x340] sm:$0xff]
        %v681 = vld [vmem:[#allocation2 + $0x348] sm:$0xff]
        %v682 = vld [vmem:[#allocation2 + $0x350] sm:$0xff]
        %v683 = vld [vmem:[#allocation2 + $0x358] sm:$0xff]
        %v684 = vld [vmem:[#allocation2 + $0x360] sm:$0xff]
        %v685 = vld [vmem:[#allocation2 + $0x368] sm:$0xff]
        %v686 = vld [vmem:[#allocation2 + $0x370] sm:$0xff]
        %v687 = vld [vmem:[#allocation2 + $0x378] sm:$0xff]
        %v688 = vld [vmem:[#allocation2 + $0x380] sm:$0xff]
        %v689 = vld [vmem:[#allocation2 + $0x388] sm:$0xff]
        %v690 = vld [vmem:[#allocation2 + $0x390] sm:$0xff]
        %v691 = vld [vmem:[#allocation2 + $0x398] sm:$0xff]
        %v692 = vld [vmem:[#allocation2 + $0x3a0] sm:$0xff]
        %v693 = vld [vmem:[#allocation2 + $0x3a8] sm:$0xff]
        %v694 = vld [vmem:[#allocation2 + $0x3b0] sm:$0xff]
        %v695 = vld [vmem:[#allocation2 + $0x3b8] sm:$0xff]
        %v696 = vld [vmem:[#allocation2 + $0x3c0] sm:$0xff]
        %v697 = vld [vmem:[#allocation2 + $0x3c8] sm:$0xff]
        %v698 = vld [vmem:[#allocation2 + $0x3d0] sm:$0xff]
        %v699 = vld [vmem:[#allocation2 + $0x3d8] sm:$0xff]
        %v700 = vld [vmem:[#allocation2 + $0x3e0] sm:$0xff]
        %v701 = vld [vmem:[#allocation2 + $0x3e8] sm:$0xff]
        %v702 = vld [vmem:[#allocation2 + $0x3f0] sm:$0xff]
        %v703 = vld [vmem:[#allocation2 + $0x3f8] sm:$0xff]
        %v704 = vld [vmem:[#allocation2 + $0x400] sm:$0xff]
        %v705 = vld [vmem:[#allocation2 + $0x408] sm:$0xff]
        %v706 = vld [vmem:[#allocation2 + $0x410] sm:$0xff]
        %v707 = vld [vmem:[#allocation2 + $0x418] sm:$0xff]
        %v708 = vld [vmem:[#allocation2 + $0x420] sm:$0xff]
        %v709 = vld [vmem:[#allocation2 + $0x428] sm:$0xff]
        %v710 = vld [vmem:[#allocation2 + $0x430] sm:$0xff]
        %v711 = vld [vmem:[#allocation2 + $0x438] sm:$0xff]
        %v712 = vld [vmem:[#allocation2 + $0x440] sm:$0xff]
        %v713 = vld [vmem:[#allocation2 + $0x448] sm:$0xff]
        %v714 = vld [vmem:[#allocation2 + $0x450] sm:$0xff]
        %v715 = vld [vmem:[#allocation2 + $0x458] sm:$0xff]
        %v716 = vld [vmem:[#allocation2 + $0x460] sm:$0xff]
        %v717 = vld [vmem:[#allocation2 + $0x468] sm:$0xff]
        %v718 = vld [vmem:[#allocation2 + $0x470] sm:$0xff]
        %v719 = vld [vmem:[#allocation2 + $0x478] sm:$0xff]
        %v720 = vld [vmem:[#allocation2 + $0x480] sm:$0xff]
        %v721 = vld [vmem:[#allocation2 + $0x488] sm:$0xff]
        %v722 = vld [vmem:[#allocation2 + $0x490] sm:$0xff]
        %v723 = vld [vmem:[#allocation2 + $0x498] sm:$0xff]
        %v724 = vld [vmem:[#allocation2 + $0x4a0] sm:$0xff]
        %v725 = vld [vmem:[#allocation2 + $0x4a8] sm:$0xff]
        %v726 = vld [vmem:[#allocation2 + $0x4b0] sm:$0xff]
        %v727 = vld [vmem:[#allocation2 + $0x4b8] sm:$0xff]
        %v728 = vld [vmem:[#allocation2 + $0x4c0] sm:$0xff]
        %v729 = vld [vmem:[#allocation2 + $0x4c8] sm:$0xff]
        %v730 = vld [vmem:[#allocation2 + $0x4d0] sm:$0xff]
        %v731 = vld [vmem:[#allocation2 + $0x4d8] sm:$0xff]
        %v732 = vld [vmem:[#allocation2 + $0x4e0] sm:$0xff]
        %v733 = vld [vmem:[#allocation2 + $0x4e8] sm:$0xff]
        %v734 = vld [vmem:[#allocation2 + $0x4f0] sm:$0xff]
        %v735 = vld [vmem:[#allocation2 + $0x4f8] sm:$0xff]
        %v736 = vld [vmem:[#allocation2 + $0x500] sm:$0xff]
        %v737 = vld [vmem:[#allocation2 + $0x508] sm:$0xff]
        %v738 = vld [vmem:[#allocation2 + $0x510] sm:$0xff]
        %v739 = vld [vmem:[#allocation2 + $0x518] sm:$0xff]
        %v740 = vld [vmem:[#allocation2 + $0x520] sm:$0xff]
        %v741 = vld [vmem:[#allocation2 + $0x528] sm:$0xff]
        %v742 = vld [vmem:[#allocation2 + $0x530] sm:$0xff]
        %v743 = vld [vmem:[#allocation2 + $0x538] sm:$0xff]
        %v744 = vld [vmem:[#allocation2 + $0x540] sm:$0xff]
        %v745 = vld [vmem:[#allocation2 + $0x548] sm:$0xff]
        %v746 = vld [vmem:[#allocation2 + $0x550] sm:$0xff]
        %v747 = vld [vmem:[#allocation2 + $0x558] sm:$0xff]
        %v748 = vld [vmem:[#allocation2 + $0x560] sm:$0xff]
        %v749 = vld [vmem:[#allocation2 + $0x568] sm:$0xff]
        %v750 = vld [vmem:[#allocation2 + $0x570] sm:$0xff]
        %v751 = vld [vmem:[#allocation2 + $0x578] sm:$0xff]
        %v752 = vld [vmem:[#allocation2 + $0x580] sm:$0xff]
        %v753 = vld [vmem:[#allocation2 + $0x588] sm:$0xff]
        %v754 = vld [vmem:[#allocation2 + $0x590] sm:$0xff]
        %v755 = vld [vmem:[#allocation2 + $0x598] sm:$0xff]
        %v756 = vld [vmem:[#allocation2 + $0x5a0] sm:$0xff]
        %v757 = vld [vmem:[#allocation2 + $0x5a8] sm:$0xff]
        %v758 = vld [vmem:[#allocation2 + $0x5b0] sm:$0xff]
        %v759 = vld [vmem:[#allocation2 + $0x5b8] sm:$0xff]
        %v760 = vld [vmem:[#allocation2 + $0x5c0] sm:$0xff]
        %v761 = vld [vmem:[#allocation2 + $0x5c8] sm:$0xff]
        %v762 = vld [vmem:[#allocation2 + $0x5d0] sm:$0xff]
        %v763 = vld [vmem:[#allocation2 + $0x5d8] sm:$0xff]
        %v764 = vld [vmem:[#allocation2 + $0x5e0] sm:$0xff]
        %v765 = vld [vmem:[#allocation2 + $0x5e8] sm:$0xff]
        %v766 = vld [vmem:[#allocation2 + $0x5f0] sm:$0xff]
        %v767 = vld [vmem:[#allocation2 + $0x5f8] sm:$0xff]
        %v768 = vld [vmem:[#allocation2 + $0x600] sm:$0xff]
        %v769 = vld [vmem:[#allocation2 + $0x608] sm:$0xff]
        %v770 = vld [vmem:[#allocation2 + $0x610] sm:$0xff]
        %v771 = vld [vmem:[#allocation2 + $0x618] sm:$0xff]
        %v772 = vld [vmem:[#allocation2 + $0x620] sm:$0xff]
        %v773 = vld [vmem:[#allocation2 + $0x628] sm:$0xff]
        %v774 = vld [vmem:[#allocation2 + $0x630] sm:$0xff]
        %v775 = vld [vmem:[#allocation2 + $0x638] sm:$0xff]
        %v776 = vld [vmem:[#allocation2 + $0x640] sm:$0xff]
        %v777 = vld [vmem:[#allocation2 + $0x648] sm:$0xff]
        %v778 = vld [vmem:[#allocation2 + $0x650] sm:$0xff]
        %v779 = vld [vmem:[#allocation2 + $0x658] sm:$0xff]
        %v780 = vld [vmem:[#allocation2 + $0x660] sm:$0xff]
        %v781 = vld [vmem:[#allocation2 + $0x668] sm:$0xff]
        %v782 = vld [vmem:[#allocation2 + $0x670] sm:$0xff]
        %v783 = vld [vmem:[#allocation2 + $0x678] sm:$0xff]
        %v784 = vld [vmem:[#allocation2 + $0x680] sm:$0xff]
        %v785 = vld [vmem:[#allocation2 + $0x688] sm:$0xff]
        %v786 = vld [vmem:[#allocation2 + $0x690] sm:$0xff]
        %v787 = vld [vmem:[#allocation2 + $0x698] sm:$0xff]
        %v788 = vld [vmem:[#allocation2 + $0x6a0] sm:$0xff]
        %v789 = vld [vmem:[#allocation2 + $0x6a8] sm:$0xff]
        %v790 = vld [vmem:[#allocation2 + $0x6b0] sm:$0xff]
        %v791 = vld [vmem:[#allocation2 + $0x6b8] sm:$0xff]
        %v792 = vld [vmem:[#allocation2 + $0x6c0] sm:$0xff]
        %v793 = vld [vmem:[#allocation2 + $0x6c8] sm:$0xff]
        %v794 = vld [vmem:[#allocation2 + $0x6d0] sm:$0xff]
        %v795 = vld [vmem:[#allocation2 + $0x6d8] sm:$0xff]
        %v796 = vld [vmem:[#allocation2 + $0x6e0] sm:$0xff]
        %v797 = vld [vmem:[#allocation2 + $0x6e8] sm:$0xff]
        %v798 = vld [vmem:[#allocation2 + $0x6f0] sm:$0xff]
        %v799 = vld [vmem:[#allocation2 + $0x6f8] sm:$0xff]
        %v800 = vld [vmem:[#allocation2 + $0x700] sm:$0xff]
        %v801 = vld [vmem:[#allocation2 + $0x708] sm:$0xff]
        %v802 = vld [vmem:[#allocation2 + $0x710] sm:$0xff]
        %v803 = vld [vmem:[#allocation2 + $0x718] sm:$0xff]
        %v804 = vld [vmem:[#allocation2 + $0x720] sm:$0xff]
        %v805 = vld [vmem:[#allocation2 + $0x728] sm:$0xff]
        %v806 = vld [vmem:[#allocation2 + $0x730] sm:$0xff]
        %v807 = vld [vmem:[#allocation2 + $0x738] sm:$0xff]
        %v808 = vld [vmem:[#allocation2 + $0x740] sm:$0xff]
        %v809 = vld [vmem:[#allocation2 + $0x748] sm:$0xff]
        %v810 = vld [vmem:[#allocation2 + $0x750] sm:$0xff]
        %v811 = vld [vmem:[#allocation2 + $0x758] sm:$0xff]
        %v812 = vld [vmem:[#allocation2 + $0x760] sm:$0xff]
        %v813 = vld [vmem:[#allocation2 + $0x768] sm:$0xff]
        %v814 = vld [vmem:[#allocation2 + $0x770] sm:$0xff]
        %v815 = vld [vmem:[#allocation2 + $0x778] sm:$0xff]
        %v816 = vld [vmem:[#allocation2 + $0x780] sm:$0xff]
        %v817 = vld [vmem:[#allocation2 + $0x788] sm:$0xff]
        %v818 = vld [vmem:[#allocation2 + $0x790] sm:$0xff]
        %v819 = vld [vmem:[#allocation2 + $0x798] sm:$0xff]
        %v820 = vld [vmem:[#allocation2 + $0x7a0] sm:$0xff]
        %v821 = vld [vmem:[#allocation2 + $0x7a8] sm:$0xff]
        %v822 = vld [vmem:[#allocation2 + $0x7b0] sm:$0xff]
        %v823 = vld [vmem:[#allocation2 + $0x7b8] sm:$0xff]
        %v824 = vld [vmem:[#allocation2 + $0x7c0] sm:$0xff]
        %v825 = vld [vmem:[#allocation2 + $0x7c8] sm:$0xff]
        %v826 = vld [vmem:[#allocation2 + $0x7d0] sm:$0xff]
        %v827 = vld [vmem:[#allocation2 + $0x7d8] sm:$0xff]
        %v828 = vld [vmem:[#allocation2 + $0x7e0] sm:$0xff]
        %v829 = vld [vmem:[#allocation2 + $0x7e8] sm:$0xff]
        %v830 = vld [vmem:[#allocation2 + $0x7f0] sm:$0xff]
        %v831 = vld [vmem:[#allocation2 + $0x7f8] sm:$0xff]
        %832 = vmatprep.subr.mxu0 %v577
        %833 = vmatpush1.msra.mxu0 %v576
        %834 = vmatprep.subr.mxu0 %v585
        %835 = vmatpush1.msra.mxu0 %v584
        %836 = vmatprep.subr.mxu0 %v593
        %837 = vmatpush1.msra.mxu0 %v592
        %838 = vmatprep.subr.mxu0 %v601
        %839 = vmatpush1.msra.mxu0 %v600
        %840 = vmatprep.subr.mxu0 %v609
        %841 = vmatpush1.msra.mxu0 %v608
        %842 = vmatprep.subr.mxu0 %v617
        %843 = vmatpush1.msra.mxu0 %v616
        %844 = vmatprep.subr.mxu0 %v625
        %845 = vmatpush1.msra.mxu0 %v624
        %846 = vmatprep.subr.mxu0 %v633
        %847 = vmatpush1.msra.mxu0 %v632
        %848 = vmatprep.subr.mxu0 %v641
        %849 = vmatpush1.msra.mxu0 %v640
        %850 = vmatprep.subr.mxu0 %v649
        %851 = vmatpush1.msra.mxu0 %v648
        %852 = vmatprep.subr.mxu0 %v657
        %853 = vmatpush1.msra.mxu0 %v656
        %854 = vmatprep.subr.mxu0 %v665
        %855 = vmatpush1.msra.mxu0 %v664
        %856 = vmatprep.subr.mxu0 %v673
        %857 = vmatpush1.msra.mxu0 %v672
        %858 = vmatprep.subr.mxu0 %v681
        %859 = vmatpush1.msra.mxu0 %v680
        %860 = vmatprep.subr.mxu0 %v689
        %861 = vmatpush1.msra.mxu0 %v688
        %862 = vmatprep.subr.mxu0 %v697
        %863 = vmatpush1.msra.mxu0 %v696
        %864 = vmatprep.subr.mxu0 %v705
        %865 = vmatpush1.msra.mxu0 %v704
        %866 = vmatprep.subr.mxu0 %v713
        %867 = vmatpush1.msra.mxu0 %v712
        %868 = vmatprep.subr.mxu0 %v721
        %869 = vmatpush1.msra.mxu0 %v720
        %870 = vmatprep.subr.mxu0 %v729
        %871 = vmatpush1.msra.mxu0 %v728
        %872 = vmatprep.subr.mxu0 %v737
        %873 = vmatpush1.msra.mxu0 %v736
        %874 = vmatprep.subr.mxu0 %v745
        %875 = vmatpush1.msra.mxu0 %v744
        %876 = vmatprep.subr.mxu0 %v753
        %877 = vmatpush1.msra.mxu0 %v752
        %878 = vmatprep.subr.mxu0 %v761
        %879 = vmatpush1.msra.mxu0 %v760
        %880 = vmatprep.subr.mxu0 %v769
        %881 = vmatpush1.msra.mxu0 %v768
        %882 = vmatprep.subr.mxu0 %v777
        %883 = vmatpush1.msra.mxu0 %v776
        %884 = vmatprep.subr.mxu0 %v785
        %885 = vmatpush1.msra.mxu0 %v784
        %886 = vmatprep.subr.mxu0 %v793
        %887 = vmatpush1.msra.mxu0 %v792
        %888 = vmatprep.subr.mxu0 %v801
        %889 = vmatpush1.msra.mxu0 %v800
        %890 = vmatprep.subr.mxu0 %v809
        %891 = vmatpush1.msra.mxu0 %v808
        %892 = vmatprep.subr.mxu0 %v817
        %893 = vmatpush1.msra.mxu0 %v816
        %894 = vmatprep.subr.mxu0 %v825
        %895 = vmatpush1.msra.mxu0 %v824
        %896 = vmatprep.mubr.f32.mxu0 %v574
        %897 = vmatmul.mubr.f32.gmra.mrb[0].mxu0 %v572
        %v898 = vpop.f32.mrb[0].mxu0
        %v899 = vadd.f32 0.0, %v898
        %v900 = vpop.f32.mrb[0].mxu0
        %v901 = vadd.f32 0.0, %v900
        %902 = vdwg.mxu0
        %903 = vmatprep.subr.mxu0 %v579
        %904 = vmatpush1.msra.mxu0 %v578
        %905 = vmatprep.subr.mxu0 %v587
        %906 = vmatpush1.msra.mxu0 %v586
        %907 = vmatprep.subr.mxu0 %v595
        %908 = vmatpush1.msra.mxu0 %v594
        %909 = vmatprep.subr.mxu0 %v603
        %910 = vmatpush1.msra.mxu0 %v602
        %911 = vmatprep.subr.mxu0 %v611
        %912 = vmatpush1.msra.mxu0 %v610
        %913 = vmatprep.subr.mxu0 %v619
        %914 = vmatpush1.msra.mxu0 %v618
        %915 = vmatprep.subr.mxu0 %v627
        %916 = vmatpush1.msra.mxu0 %v626
        %917 = vmatprep.subr.mxu0 %v635
        %918 = vmatpush1.msra.mxu0 %v634
        %919 = vmatprep.subr.mxu0 %v643
        %920 = vmatpush1.msra.mxu0 %v642
        %921 = vmatprep.subr.mxu0 %v651
        %922 = vmatpush1.msra.mxu0 %v650
        %923 = vmatprep.subr.mxu0 %v659
        %924 = vmatpush1.msra.mxu0 %v658
        %925 = vmatprep.subr.mxu0 %v667
        %926 = vmatpush1.msra.mxu0 %v666
        %927 = vmatprep.subr.mxu0 %v675
        %928 = vmatpush1.msra.mxu0 %v674
        %929 = vmatprep.subr.mxu0 %v683
        %930 = vmatpush1.msra.mxu0 %v682
        %931 = vmatprep.subr.mxu0 %v691
        %932 = vmatpush1.msra.mxu0 %v690
        %933 = vmatprep.subr.mxu0 %v699
        %934 = vmatpush1.msra.mxu0 %v698
        %935 = vmatprep.subr.mxu0 %v707
        %936 = vmatpush1.msra.mxu0 %v706
        %937 = vmatprep.subr.mxu0 %v715
        %938 = vmatpush1.msra.mxu0 %v714
        %939 = vmatprep.subr.mxu0 %v723
        %940 = vmatpush1.msra.mxu0 %v722
        %941 = vmatprep.subr.mxu0 %v731
        %942 = vmatpush1.msra.mxu0 %v730
        %943 = vmatprep.subr.mxu0 %v739
        %944 = vmatpush1.msra.mxu0 %v738
        %945 = vmatprep.subr.mxu0 %v747
        %946 = vmatpush1.msra.mxu0 %v746
        %947 = vmatprep.subr.mxu0 %v755
        %948 = vmatpush1.msra.mxu0 %v754
        %949 = vmatprep.subr.mxu0 %v763
        %950 = vmatpush1.msra.mxu0 %v762
        %951 = vmatprep.subr.mxu0 %v771
        %952 = vmatpush1.msra.mxu0 %v770
        %953 = vmatprep.subr.mxu0 %v779
        %954 = vmatpush1.msra.mxu0 %v778
        %955 = vmatprep.subr.mxu0 %v787
        %956 = vmatpush1.msra.mxu0 %v786
        %957 = vmatprep.subr.mxu0 %v795
        %958 = vmatpush1.msra.mxu0 %v794
        %959 = vmatprep.subr.mxu0 %v803
        %960 = vmatpush1.msra.mxu0 %v802
        %961 = vmatprep.subr.mxu0 %v811
        %962 = vmatpush1.msra.mxu0 %v810
        %963 = vmatprep.subr.mxu0 %v819
        %964 = vmatpush1.msra.mxu0 %v818
        %965 = vmatprep.subr.mxu0 %v827
        %966 = vmatpush1.msra.mxu0 %v826
        %967 = vmatprep.mubr.f32.mxu0 %v574
        %968 = vmatmul.mubr.f32.gmra.mrb[0].mxu0 %v572
        %v969 = vpop.f32.mrb[0].mxu0
        %v970 = vadd.f32 0.0, %v969
        %v971 = vpop.f32.mrb[0].mxu0
        %v972 = vadd.f32 0.0, %v971
        %973 = vdwg.mxu0
        %974 = vmatprep.subr.mxu0 %v581
        %975 = vmatpush1.msra.mxu0 %v580
        %976 = vmatprep.subr.mxu0 %v589
        %977 = vmatpush1.msra.mxu0 %v588
        %978 = vmatprep.subr.mxu0 %v597
        %979 = vmatpush1.msra.mxu0 %v596
        %980 = vmatprep.subr.mxu0 %v605
        %981 = vmatpush1.msra.mxu0 %v604
        %982 = vmatprep.subr.mxu0 %v613
        %983 = vmatpush1.msra.mxu0 %v612
        %984 = vmatprep.subr.mxu0 %v621
        %985 = vmatpush1.msra.mxu0 %v620
        %986 = vmatprep.subr.mxu0 %v629
        %987 = vmatpush1.msra.mxu0 %v628
        %988 = vmatprep.subr.mxu0 %v637
        %989 = vmatpush1.msra.mxu0 %v636
        %990 = vmatprep.subr.mxu0 %v645
        %991 = vmatpush1.msra.mxu0 %v644
        %992 = vmatprep.subr.mxu0 %v653
        %993 = vmatpush1.msra.mxu0 %v652
        %994 = vmatprep.subr.mxu0 %v661
        %995 = vmatpush1.msra.mxu0 %v660
        %996 = vmatprep.subr.mxu0 %v669
        %997 = vmatpush1.msra.mxu0 %v668
        %998 = vmatprep.subr.mxu0 %v677
        %999 = vmatpush1.msra.mxu0 %v676
        %1000 = vmatprep.subr.mxu0 %v685
        %1001 = vmatpush1.msra.mxu0 %v684
        %1002 = vmatprep.subr.mxu0 %v693
        %1003 = vmatpush1.msra.mxu0 %v692
        %1004 = vmatprep.subr.mxu0 %v701
        %1005 = vmatpush1.msra.mxu0 %v700
        %1006 = vmatprep.subr.mxu0 %v709
        %1007 = vmatpush1.msra.mxu0 %v708
        %1008 = vmatprep.subr.mxu0 %v717
        %1009 = vmatpush1.msra.mxu0 %v716
        %1010 = vmatprep.subr.mxu0 %v725
        %1011 = vmatpush1.msra.mxu0 %v724
        %1012 = vmatprep.subr.mxu0 %v733
        %1013 = vmatpush1.msra.mxu0 %v732
        %1014 = vmatprep.subr.mxu0 %v741
        %1015 = vmatpush1.msra.mxu0 %v740
        %1016 = vmatprep.subr.mxu0 %v749
        %1017 = vmatpush1.msra.mxu0 %v748
        %1018 = vmatprep.subr.mxu0 %v757
        %1019 = vmatpush1.msra.mxu0 %v756
        %1020 = vmatprep.subr.mxu0 %v765
        %1021 = vmatpush1.msra.mxu0 %v764
        %1022 = vmatprep.subr.mxu0 %v773
        %1023 = vmatpush1.msra.mxu0 %v772
        %1024 = vmatprep.subr.mxu0 %v781
        %1025 = vmatpush1.msra.mxu0 %v780
        %1026 = vmatprep.subr.mxu0 %v789
        %1027 = vmatpush1.msra.mxu0 %v788
        %1028 = vmatprep.subr.mxu0 %v797
        %1029 = vmatpush1.msra.mxu0 %v796
        %1030 = vmatprep.subr.mxu0 %v805
        %1031 = vmatpush1.msra.mxu0 %v804
        %1032 = vmatprep.subr.mxu0 %v813
        %1033 = vmatpush1.msra.mxu0 %v812
        %1034 = vmatprep.subr.mxu0 %v821
        %1035 = vmatpush1.msra.mxu0 %v820
        %1036 = vmatprep.subr.mxu0 %v829
        %1037 = vmatpush1.msra.mxu0 %v828
        %1038 = vmatprep.mubr.f32.mxu0 %v574
        %1039 = vmatmul.mubr.f32.gmra.mrb[0].mxu0 %v572
        %v1040 = vpop.f32.mrb[0].mxu0
        %v1041 = vadd.f32 0.0, %v1040
        %v1042 = vpop.f32.mrb[0].mxu0
        %v1043 = vadd.f32 0.0, %v1042
        %1044 = vdwg.mxu0
        %1045 = vmatprep.subr.mxu0 %v583
        %1046 = vmatpush1.msra.mxu0 %v582
        %1047 = vmatprep.subr.mxu0 %v591
        %1048 = vmatpush1.msra.mxu0 %v590
        %1049 = vmatprep.subr.mxu0 %v599
        %1050 = vmatpush1.msra.mxu0 %v598
        %1051 = vmatprep.subr.mxu0 %v607
        %1052 = vmatpush1.msra.mxu0 %v606
        %1053 = vmatprep.subr.mxu0 %v615
        %1054 = vmatpush1.msra.mxu0 %v614
        %1055 = vmatprep.subr.mxu0 %v623
        %1056 = vmatpush1.msra.mxu0 %v622
        %1057 = vmatprep.subr.mxu0 %v631
        %1058 = vmatpush1.msra.mxu0 %v630
        %1059 = vmatprep.subr.mxu0 %v639
        %1060 = vmatpush1.msra.mxu0 %v638
        %1061 = vmatprep.subr.mxu0 %v647
        %1062 = vmatpush1.msra.mxu0 %v646
        %1063 = vmatprep.subr.mxu0 %v655
        %1064 = vmatpush1.msra.mxu0 %v654
        %1065 = vmatprep.subr.mxu0 %v663
        %1066 = vmatpush1.msra.mxu0 %v662
        %1067 = vmatprep.subr.mxu0 %v671
        %1068 = vmatpush1.msra.mxu0 %v670
        %1069 = vmatprep.subr.mxu0 %v679
        %1070 = vmatpush1.msra.mxu0 %v678
        %1071 = vmatprep.subr.mxu0 %v687
        %1072 = vmatpush1.msra.mxu0 %v686
        %1073 = vmatprep.subr.mxu0 %v695
        %1074 = vmatpush1.msra.mxu0 %v694
        %1075 = vmatprep.subr.mxu0 %v703
        %1076 = vmatpush1.msra.mxu0 %v702
        %1077 = vmatprep.subr.mxu0 %v711
        %1078 = vmatpush1.msra.mxu0 %v710
        %1079 = vmatprep.subr.mxu0 %v719
        %1080 = vmatpush1.msra.mxu0 %v718
        %1081 = vmatprep.subr.mxu0 %v727
        %1082 = vmatpush1.msra.mxu0 %v726
        %1083 = vmatprep.subr.mxu0 %v735
        %1084 = vmatpush1.msra.mxu0 %v734
        %1085 = vmatprep.subr.mxu0 %v743
        %1086 = vmatpush1.msra.mxu0 %v742
        %1087 = vmatprep.subr.mxu0 %v751
        %1088 = vmatpush1.msra.mxu0 %v750
        %1089 = vmatprep.subr.mxu0 %v759
        %1090 = vmatpush1.msra.mxu0 %v758
        %1091 = vmatprep.subr.mxu0 %v767
        %1092 = vmatpush1.msra.mxu0 %v766
        %1093 = vmatprep.subr.mxu0 %v775
        %1094 = vmatpush1.msra.mxu0 %v774
        %1095 = vmatprep.subr.mxu0 %v783
        %1096 = vmatpush1.msra.mxu0 %v782
        %1097 = vmatprep.subr.mxu0 %v791
        %1098 = vmatpush1.msra.mxu0 %v790
        %1099 = vmatprep.subr.mxu0 %v799
        %1100 = vmatpush1.msra.mxu0 %v798
        %1101 = vmatprep.subr.mxu0 %v807
        %1102 = vmatpush1.msra.mxu0 %v806
        %1103 = vmatprep.subr.mxu0 %v815
        %1104 = vmatpush1.msra.mxu0 %v814
        %1105 = vmatprep.subr.mxu0 %v823
        %1106 = vmatpush1.msra.mxu0 %v822
        %1107 = vmatprep.subr.mxu0 %v831
        %1108 = vmatpush1.msra.mxu0 %v830
        %1109 = vmatprep.mubr.f32.mxu0 %v574
        %1110 = vmatmul.mubr.f32.gmra.mrb[0].mxu0 %v572
        %v1111 = vpop.f32.mrb[0].mxu0
        %v1112 = vadd.f32 0.0, %v1111
        %v1113 = vpop.f32.mrb[0].mxu0
        %v1114 = vadd.f32 0.0, %v1113
        %1115 = vdwg.mxu0
        %1116 = vst [vmem:[%s266] sm:$0x1f] %v899
        %1117 = vst [vmem:[%s266 + $0x8] sm:$0x1f] %v901
        %1118 = vst [vmem:[%s266 + $0x10] sm:$0x1f] %v970
        %1119 = vst [vmem:[%s266 + $0x18] sm:$0x1f] %v972
        %1120 = vst [vmem:[%s266 + $0x20] sm:$0x1f] %v1041
        %1121 = vst [vmem:[%s266 + $0x28] sm:$0x1f] %v1043
        %1122 = vst [vmem:[%s266 + $0x30] sm:$0x1f] %v1112
        %1123 = vst [vmem:[%s266 + $0x38] sm:$0x1f] %v1114
        %p1124 = scmp.lt.s32.totalorder %s18, 1
        %s1125 = scalar_select %p1124, %s18, 1
        %s1126 = smul.addr %s1125, 8
        %s1127 = smul.addr %s1126, 8
        %s1128 = scalar_lea.vmem %s6, %s1127
        // Predicated region
        $region49: #{tpu_custom_call.1} parent=43 // pred_check
          %p1129 = pneg %p167
        $region50: #{tpu_custom_call.1} parent=43 // pred_check_branch
          %1131 = sbr.rel (%p1129) target = $region52
        $region51: #{tpu_custom_call.1} parent=43 // pred_region
          _
        $region52: #{tpu_custom_call.1} parent=43 // pred_fallthru
          _
      $region44: #{tpu_custom_call.1} parent=5 // pred_fallthru
        _
      %p1132 = scmp.le.s32.totalorder 2, %s13
      // Predicated region
      $region53: #{tpu_custom_call.1} parent=5 // pred_check
        %p1133 = pneg %p1132
      $region54: #{tpu_custom_call.1} parent=5 // pred_check_branch
        %1135 = sbr.rel (%p1133) target = $region56
      $region55: #{tpu_custom_call.1} parent=5 // pred_region
        %s1136 = ssub.s32 %s13, 2
        // Predicated region
        $region57: #{tpu_custom_call.1} parent=55 // pred_check
          %p1137 = pneg %p173
        $region58: #{tpu_custom_call.1} parent=55 // pred_check_branch
          %1139 = sbr.rel (%p1137) target = $region60
        $region59: #{tpu_custom_call.1} parent=55 // pred_region
          %p1140 = scmp.lt.s32.totalorder %s19, 1
          %s1141 = scalar_select %p1140, %s19, 1
          %s1142 = smul.addr %s1141, 8
          %s1143 = smul.addr %s1142, 8
          %s1144 = scalar_lea.vmem %s6, %s1143
        $region60: #{tpu_custom_call.1} parent=55 // pred_fallthru
          _
      $region56: #{tpu_custom_call.1} parent=5 // pred_fallthru
        _
    $region6: #{tpu_custom_call.1} parent=1 // loop_footer
      %s17 = sadd.s32 1, %s13
    $region7: #{tpu_custom_call.1} parent=1 // loop_footer_branch
      %12 = sbr.rel target = $region3
    $region8: #{tpu_custom_call.1} parent=1 // loop_exit
      _
    %1145 = vsyncpa [#allocation3], 1
    %s1146 = scalar_lea.sflag [#allocation3], 1
    %1147 = vsyncpa %s1146, 1

</llo_original>
